<compile_context>
chip_gen: v7x
topology: tpu7x:2x2x1
jax: 0.10.0
libtpu: 0.0.40
codegen_flags: <defaults>
</compile_context>

<pallas_src>
import jax
import jax.numpy as jnp
import numpy as np
from jax import lax
from jax.experimental import pallas as pl
from jax.experimental.pallas import tpu as pltpu

# Module hyper-parameters (PyTorch __init__ defaults).
ALPHA = 0.25
GAMMA = 2          # implemented as square() since gamma == 2
MARGIN = 2.0
SCALE = 16.0
EPS = 1e-12
PAIR_EPS = 1e-6    # F.pairwise_distance default eps (added to the difference)

_MIB = 1024 * 1024


def _round_up(x, m):
    return ((x + m - 1) // m) * m


def _cdiv(a, b):
    return -(-a // b)


def _vmem_capacity_bytes():
    """Physical VMEM per TensorCore (generation aware), with a safe fallback."""
    try:
        return int(pltpu.get_tpu_info().vmem_capacity_bytes)
    except Exception:
        return 64 * _MIB   # conservative: v7x per-TC VMEM


def _pick_n_tile(N, n_tile):
    if n_tile is not None:
        tn = int(n_tile)
        if tn != N and tn % 128 != 0:
            raise ValueError("n_tile must equal N or be a multiple of 128")
        return min(tn, N)
    # Small batches stay as one row tile; large batches split into 256-row
    # tiles so the parallel grid axis can shard rows across TensorCores.
    return N if N <= 256 else 256


def _legalize_d_tile(tk, D):
    """tk must be D itself (D <= 128) or a multiple of 128 that is <= D."""
    if D <= 128:
        return D
    max_tk = (D // 128) * 128
    tk = max(128, min(int(tk), max_tk))
    return (tk // 128) * 128


def _pick_d_tile(tn, D, itemsize, vmem_cap, d_tile):
    if d_tile is not None:
        tk = int(d_tile)
        if D > 128 and tk % 128 != 0:
            raise ValueError("d_tile must be a multiple of 128 when D > 128")
        return _legalize_d_tile(tk, D)
    # Per-input, per-pipeline-buffer byte budget (generation aware).
    budget = 8 * _MIB if vmem_cap >= 96 * _MIB else 4 * _MIB
    # Effective bytes/element: native input buffer plus a share of the f32
    # upcast/diff/sq temporaries for sub-32-bit inputs.
    eff = itemsize if itemsize >= 4 else 5
    cap_cols = max(128, (budget // max(1, tn * eff)) // 128 * 128)
    tk = _legalize_d_tile(cap_cols, D)
    # Guarantee >= 4 reduction steps so DMA and compute overlap, as long as
    # tiles stay >= ~512 KiB (below that, per-step overhead dominates).
    if _cdiv(D, tk) < 4:
        tk4 = _legalize_d_tile(_round_up(_cdiv(D, 4), 128), D)
        if tn * tk4 * itemsize >= 512 * 1024:
            tk = min(tk, tk4)
    return tk


def _make_dist_kernel(D, tk, needs_mask):
    """Kernel: per-row sum of (o1 - o2 + eps)^2 streamed over D; emits sqrt."""
    assert tk <= 128 or tk % 128 == 0
    aw = min(128, tk)   # accumulator lane width

    def kernel(o1_ref, o2_ref, dist_ref, acc_ref):
        k = pl.program_id(1)

        # ---- init accumulator on the first reduction step of this row tile ----
        @pl.when(k == 0)
        def _():
            acc_ref[...] = jnp.zeros_like(acc_ref)

        # ---- per-tile squared differences (upcast to f32 in VMEM) ----
        o1 = o1_ref[...].astype(jnp.float32)            # (tn, tk)
        o2 = o2_ref[...].astype(jnp.float32)
        diff = o1 - o2 + PAIR_EPS                        # per-element eps (torch)
        if needs_mask:
            col = k * tk + lax.broadcasted_iota(jnp.int32, diff.shape, 1)
            diff = jnp.where(col < D, diff, 0.0)         # zero padded lanes
        sq = diff * diff                                 # (tn, tk)

        # ---- pure-VPU lane-slab accumulation (exact f32) ----
        # Static, 128-aligned slices -> no relayout; no MXU/XLU in the hot loop.
        acc = acc_ref[...]                               # (tn, aw)
        for lo in range(0, tk, 128):
            acc = acc + sq[:, lo:lo + aw]
        acc_ref[...] = acc

        # ---- epilogue: one cross-lane reduce + sqrt, lane-dense output row ----
        @pl.when(k == pl.num_programs(1) - 1)
        def _():
            ones = jnp.ones((8, aw), dtype=jnp.float32)
            sums = lax.dot_general(                      # (8, tn) lane-dense
                ones, acc_ref[...],
                dimension_numbers=(((1,), (1,)), ((), ())),
                precision=lax.Precision.HIGHEST,         # once per row tile
                preferred_element_type=jnp.float32)
            dist_ref[...] = jnp.sqrt(sums[0:1, :])       # (1, tn)

    return kernel


def _focal_epilogue_kernel(dist_ref, label_ref, out_ref):
    """Tiny O(N) kernel: mining + focal terms + final scalar (matches torch)."""
    dist = dist_ref[...]                                 # (1, N) f32
    lbl = label_ref[...]                                 # (1, N) f32
    sim_mask = lbl == 1.0
    dis_mask = lbl == 0.0

    count_sim = jnp.sum(sim_mask.astype(jnp.float32), keepdims=True)     # (1,1)
    has_sim = count_sim > 0.0
    max_sim = jnp.max(jnp.where(sim_mask, dist, -jnp.inf), keepdims=True)
    mine_mask = jnp.logical_and(
        dis_mask,
        jnp.logical_or(dist - 0.4 < max_sim, jnp.logical_not(has_sim)))

    pt = 1.0 / (1.0 + jnp.exp(-dist))                                     # sigmoid
    dis_term = (ALPHA * SCALE
                * jnp.square(jnp.maximum(MARGIN - dist, 0.0))
                * jnp.square(1.0 - pt))                                   # gamma=2
    sim_term = ((1.0 - ALPHA) * SCALE
                * jnp.square(dist)
                * jnp.square(pt + EPS))                                   # gamma=2

    sum_dis = jnp.sum(jnp.where(mine_mask, dis_term, 0.0), keepdims=True)
    sum_sim = jnp.sum(jnp.where(sim_mask, sim_term, 0.0), keepdims=True)
    count_dis = jnp.sum(mine_mask.astype(jnp.float32), keepdims=True)

    out_ref[...] = (sum_dis + sum_sim) / (count_sim + count_dis)


def pairwise_distance_rows(output1, output2, *, d_tile=None, n_tile=None):
    """Row-wise ||o1 - o2 + eps||_2 as a lane-dense (1, N) f32 row (Pallas)."""
    N, D = output1.shape
    assert output2.shape == (N, D)
    isz = jnp.dtype(output1.dtype).itemsize

    vmem_cap = _vmem_capacity_bytes()
    tn = _pick_n_tile(N, n_tile)
    tk = _pick_d_tile(tn, D, isz, vmem_cap, d_tile)
    grid_n = pl.cdiv(N, tn)
    grid_d = pl.cdiv(D, tk)
    needs_mask = (grid_d * tk) != D

    kernel = _make_dist_kernel(D=D, tk=tk, needs_mask=needs_mask)

    # Scoped-VMEM limit: actual need + ~16 MiB headroom, capped at physical.
    need = (4 * tn * tk * isz        # 2 inputs x 2 pipeline buffers (native dtype)
            + 3 * tn * tk * 4        # f32 upcast / diff / sq temporaries
            + tn * 128 * 4           # accumulator slab
            + 2 * tn * 4)            # output row blocks
    vmem_limit = int(min(vmem_cap, max(32 * _MIB, need + 16 * _MIB)))

    cost = pl.CostEstimate(
        flops=int(5 * N * D),                  # sub, eps-add, square, accumulate
        transcendentals=0,
        bytes_accessed=int(2 * N * D * isz + N * 4))

    return pl.pallas_call(
        kernel,
        out_shape=jax.ShapeDtypeStruct((1, N), jnp.float32),
        grid_spec=pltpu.PrefetchScalarGridSpec(
            num_scalar_prefetch=0,
            grid=(grid_n, grid_d),
            in_specs=[
                pl.BlockSpec((tn, tk), lambda i, k: (i, k)),   # output1 tile
                pl.BlockSpec((tn, tk), lambda i, k: (i, k)),   # output2 tile
            ],
            out_specs=pl.BlockSpec((1, tn), lambda i, k: (0, i)),
            scratch_shapes=[pltpu.VMEM((tn, min(128, tk)), jnp.float32)],
        ),
        compiler_params=pltpu.CompilerParams(
            dimension_semantics=("parallel", "arbitrary"),
            vmem_limit_bytes=vmem_limit,
        ),
        cost_estimate=cost,
    )(output1, output2)


def focal_contrastive_loss(output1, output2, label, *, d_tile=None, n_tile=None):
    """output1, output2: (N, D) float (any dtype); label: (N,) {0,1}. Scalar."""
    N, _ = output1.shape
    dist_row = pairwise_distance_rows(output1, output2,
                                      d_tile=d_tile, n_tile=n_tile)
    label_row = jnp.asarray(label).reshape(1, N).astype(jnp.float32)
    loss = pl.pallas_call(
        _focal_epilogue_kernel,
        out_shape=jax.ShapeDtypeStruct((1, 1), jnp.float32),
    )(dist_row, label_row)
    return loss[0, 0]


def _reference_numpy(o1, o2, lbl):
    """Pure numpy mirror of the PyTorch forward, for a sanity check."""
    o1 = np.asarray(o1, np.float32)
    o2 = np.asarray(o2, np.float32)
    lbl = np.asarray(lbl, np.float32)
    dist = np.sqrt(np.sum((o1 - o2 + PAIR_EPS) ** 2, axis=1))
    sim = dist[lbl == 1]
    dis = dist[lbl == 0]
    if len(sim) > 0:
        mine_dis = dis[dis - 0.4 < np.max(sim)]
    else:
        mine_dis = dis
    pt_sim = 1.0 / (1.0 + np.exp(-sim))
    pt_dis = 1.0 / (1.0 + np.exp(-mine_dis))
    dis_ = np.clip(MARGIN - mine_dis, 0.0, None) ** 2
    sim_ = sim ** 2
    dis_final = ALPHA * SCALE * dis_ * (1.0 - pt_dis) ** GAMMA
    sim_final = (1.0 - ALPHA) * SCALE * sim_ * (pt_sim + EPS) ** GAMMA
    return (dis_final.sum() + sim_final.sum()) / int(len(sim) + len(mine_dis))


if __name__ == "__main__":
    key = jax.random.PRNGKey(0)
    k1, k2, k3, k4, k5, k6, k7, k8 = jax.random.split(key, 8)

    # Test A: f32 inputs, D tiled over 3 reduction steps.
    N, D = 16, 384
    o1 = jax.random.normal(k1, (N, D), dtype=jnp.float32)
    o2 = jax.random.normal(k2, (N, D), dtype=jnp.float32)
    lbl = (jax.random.uniform(k3, (N,)) > 0.5).astype(jnp.float32)
    loss_a = jax.block_until_ready(focal_contrastive_loss(o1, o2, lbl, d_tile=128))
    ref_a = _reference_numpy(o1, o2, lbl)
    assert np.allclose(np.asarray(loss_a), ref_a, rtol=1e-4, atol=1e-4), (loss_a, ref_a)

    # Test B: ragged D (masked last feature block) and no similar pairs.
    N2, D2 = 8, 200
    o1b = jax.random.normal(k4, (N2, D2), dtype=jnp.float32)
    o2b = jax.random.normal(k5, (N2, D2), dtype=jnp.float32)
    lblb = jnp.zeros((N2,), dtype=jnp.float32)
    loss_b = jax.block_until_ready(focal_contrastive_loss(o1b, o2b, lblb))
    ref_b = _reference_numpy(o1b, o2b, lblb)
    assert np.allclose(np.asarray(loss_b), ref_b, rtol=1e-4, atol=1e-4), (loss_b, ref_b)

    # Test C: bf16 inputs kept native in HBM, upcast to f32 inside the kernel.
    o1c = o1.astype(jnp.bfloat16)
    o2c = o2.astype(jnp.bfloat16)
    loss_c = jax.block_until_ready(focal_contrastive_loss(o1c, o2c, lbl))
    ref_c = _reference_numpy(o1c.astype(jnp.float32), o2c.astype(jnp.float32), lbl)
    assert np.allclose(np.asarray(loss_c), ref_c, rtol=1e-3, atol=1e-4), (loss_c, ref_c)

    # Test D: multi-tile grid on both axes (parallel row tiles x feature tiles).
    N3, D3 = 256, 256
    o1d = jax.random.normal(k6, (N3, D3), dtype=jnp.float32)
    o2d = jax.random.normal(k7, (N3, D3), dtype=jnp.float32)
    lbld = (jax.random.uniform(k8, (N3,)) > 0.5).astype(jnp.float32)
    loss_d = jax.block_until_ready(
        focal_contrastive_loss(o1d, o2d, lbld, d_tile=128, n_tile=128))
    ref_d = _reference_numpy(o1d, o2d, lbld)
    assert np.allclose(np.asarray(loss_d), ref_d, rtol=1e-4, atol=1e-3), (loss_d, ref_d)

    print("KERNEL_OK")
</pallas_src>

<mosaic_0001>
module attributes {stable_mosaic.version = 11 : i64} {
  func.func @kernel(%arg0: i32, %arg1: i32, %arg2: memref<16x128xf32, #tpu.memory_space<vmem>>, %arg3: memref<16x128xf32, #tpu.memory_space<vmem>>, %arg4: memref<1x16xf32, #tpu.memory_space<vmem>>, %arg5: memref<16x128xf32, #tpu.memory_space<vmem>>) attributes {dimension_semantics = [#tpu.dimension_semantics<parallel>, #tpu.dimension_semantics<arbitrary>], iteration_bounds = array<i64: 1, 3>, scalar_prefetch = 0 : i64, scratch_operands = 1 : i64, tpu.core_type = #tpu.core_type<tc>, window_params = [{transform_indices = @transform_0, window_bounds = array<i64: 16, 128>}, {transform_indices = @transform_1, window_bounds = array<i64: 16, 128>}, {transform_indices = @transform_2, window_bounds = array<i64: 1, 16>}]} {
    %c0_i32 = arith.constant 0 : i32
    %0 = arith.cmpi eq, %arg1, %c0_i32 : i32
    %1 = arith.extui %0 : i1 to i32
    %c0_i32_0 = arith.constant 0 : i32
    %2 = arith.cmpi ne, %1, %c0_i32_0 : i32
    scf.if %2 {
      %cst_9 = arith.constant 0.000000e+00 : f32
      %15 = vector.broadcast %cst_9 : f32 to vector<16x128xf32>
      %c0_10 = arith.constant 0 : index
      %c0_11 = arith.constant 0 : index
      %16 = vector.load %arg5[%c0_10, %c0_11] : memref<16x128xf32, #tpu.memory_space<vmem>>, vector<16x128xf32>
      tpu.vector_store %arg5[%c0_10, %c0_11], %15 {strides = array<i32>} : memref<16x128xf32, #tpu.memory_space<vmem>>, vector<16x128xf32>,
    } else {
    }
    %c0 = arith.constant 0 : index
    %c0_1 = arith.constant 0 : index
    %3 = vector.load %arg2[%c0, %c0_1] : memref<16x128xf32, #tpu.memory_space<vmem>>, vector<16x128xf32>
    %c0_2 = arith.constant 0 : index
    %c0_3 = arith.constant 0 : index
    %4 = vector.load %arg3[%c0_2, %c0_3] : memref<16x128xf32, #tpu.memory_space<vmem>>, vector<16x128xf32>
    %5 = arith.subf %3, %4 : vector<16x128xf32>
    %cst = arith.constant 9.99999997E-7 : f32
    %6 = vector.broadcast %cst : f32 to vector<16x128xf32>
    %7 = arith.addf %5, %6 : vector<16x128xf32>
    %8 = arith.mulf %7, %7 : vector<16x128xf32>
    %c0_4 = arith.constant 0 : index
    %c0_5 = arith.constant 0 : index
    %9 = vector.load %arg5[%c0_4, %c0_5] : memref<16x128xf32, #tpu.memory_space<vmem>>, vector<16x128xf32>
    %10 = arith.addf %9, %8 : vector<16x128xf32>
    %c0_6 = arith.constant 0 : index
    %c0_7 = arith.constant 0 : index
    %11 = vector.load %arg5[%c0_6, %c0_7] : memref<16x128xf32, #tpu.memory_space<vmem>>, vector<16x128xf32>
    tpu.vector_store %arg5[%c0_6, %c0_7], %10 {strides = array<i32>} : memref<16x128xf32, #tpu.memory_space<vmem>>, vector<16x128xf32>,
    %c2_i32 = arith.constant 2 : i32
    %12 = arith.cmpi eq, %arg1, %c2_i32 : i32
    %13 = arith.extui %12 : i1 to i32
    %c0_i32_8 = arith.constant 0 : i32
    %14 = arith.cmpi ne, %13, %c0_i32_8 : i32
    scf.if %14 {
      %cst_9 = arith.constant 1.000000e+00 : f32
      %15 = vector.broadcast %cst_9 : f32 to vector<8x128xf32>
      %c0_10 = arith.constant 0 : index
      %c0_11 = arith.constant 0 : index
      %16 = vector.load %arg5[%c0_10, %c0_11] : memref<16x128xf32, #tpu.memory_space<vmem>>, vector<16x128xf32>
      %cst_12 = arith.constant dense<0.000000e+00> : vector<8x16xf32>
      %17 = tpu.matmul %15, %16, %cst_12 {dimension_numbers = #tpu.dot_dimension_numbers<[1], [1], [0], [0], [0, 0, 1, 0], [], []>, precision = #tpu.contract_precision<fp32>} : vector<8x128xf32>, vector<16x128xf32>, vector<8x16xf32> -> vector<8x16xf32>
      %18 = vector.extract_strided_slice %17 {offsets = [0, 0], sizes = [1, 16], strides = [1, 1]} : vector<8x16xf32> to vector<1x16xf32>
      %19 = math.sqrt %18 : vector<1x16xf32>
      %c0_13 = arith.constant 0 : index
      %c0_14 = arith.constant 0 : index
      %20 = vector.load %arg4[%c0_13, %c0_14] : memref<1x16xf32, #tpu.memory_space<vmem>>, vector<1x16xf32>
      tpu.vector_store %arg4[%c0_13, %c0_14], %19 {strides = array<i32>} : memref<1x16xf32, #tpu.memory_space<vmem>>, vector<1x16xf32>,
    } else {
    }
    return
  }
  func.func @transform_0(%arg0: i32, %arg1: i32) -> (i32, i32) {
    %c0_i32 = arith.constant 0 : i32
    return %arg0, %arg1 : i32, i32
  }
  func.func @transform_1(%arg0: i32, %arg1: i32) -> (i32, i32) {
    %c0_i32 = arith.constant 0 : i32
    return %arg0, %arg1 : i32, i32
  }
  func.func @transform_2(%arg0: i32, %arg1: i32) -> (i32, i32) {
    %c0_i32 = arith.constant 0 : i32
    %c0_i32_0 = arith.constant 0 : i32
    return %c0_i32, %arg0 : i32, i32
  }
}

</mosaic_0001>

<llo_original>
// kernel: tpu_custom_call.1
$region0: #{tpu_custom_call.1}
  #allocation0 [shape = 'u32[]', space=smem, size = 0x4, offset = 0x4, fixed_abs, tag = 'smem constant byte address 0x4 - core index']
  #allocation1 [shape = 'u32[144,128]{1,0:T(1,128)}', space=vmem, size = 0x12000, scoped, tag = 'internal scratch']
  #allocation2 [shape = 'f32[16,128]{1,0:T(8,128)}', space=vmem, size = 0x2000, scoped, tag = 'scratch operand']
  %s0 = inlined_call_operand.hbm [shape: f32[16,384], index: 0, kind: input, shape index: {}]
  %s1 = inlined_call_operand.hbm [shape: f32[16,384], index: 1, kind: input, shape index: {}]
  %s2 = inlined_call_operand.hbm [shape: f32[1,16], index: 2, kind: output, shape index: {}]
  %s3 = sld [smem:[#allocation0]]
  $region57: #{tpu_custom_call.1} parent=0
    _
  %s5 = ssub.s32 1, %s3
  %s6 = scalar_select 0, %s5, %s3
  $region1: #{tpu_custom_call.1} parent=0
    #allocation3 [shape = 'u8[16384]{0}', space=vmem, size = 0x4000, scoped, tag = 'input window, operand 0']
    #allocation4 [shape = 's32[2]{0}', space=sflag, size = 0x8, scoped, tag = 'scoped memory for tpu_custom_call.1']
    #allocation5 [shape = 's32[2]{0}', space=sflag, size = 0x8, scoped, tag = 'scoped memory for tpu_custom_call.1']
    #allocation6 [shape = 'u8[16384]{0}', space=vmem, size = 0x4000, scoped, tag = 'input window, operand 1']
    #allocation7 [shape = 's32[2]{0}', space=sflag, size = 0x8, scoped, tag = 'scoped memory for tpu_custom_call.1']
    #allocation8 [shape = 'u8[512]{0}', space=vmem, size = 0x400, scoped, tag = 'output window, operand 0, single buffered']
    %7 = vsyncpa [#allocation4], 0
    %s8 = scalar_lea.sflag [#allocation4], 1
    %9 = vsyncpa %s8, 0
    %10 = vsyncpa [#allocation7], 0
    %s11 = scalar_lea.sflag [#allocation7], 1
    %12 = vsyncpa %s11, 0
    %13 = vsyncpa [#allocation5], 0
    loop: start=0, step=1, limit=5
    $region2: #{tpu_custom_call.1} parent=1 // loop_pre_header
      _
    $region3: #{tpu_custom_call.1} parent=1 // loop_header
      %s15 = sphi 0, %s19
      %p16 = scmp.ge.s32.totalorder %s15, 5
      %s22 = sphi 0, %s34
      %s23 = sphi 0, %s30
      %s24 = sphi 0, %s22
      %s25 = sphi 0, %s23
      %s26 = sphi 0, %s24
      %s27 = sphi 0, %s25
      %s39 = sphi 0, %s41
      %s42 = sphi 0, %s39
      %s43 = sphi 0, %s42
      %s59 = sphi 0, %s43
      %s67 = sphi 0, %s69
      %s70 = sphi 0, %s67
      %s71 = sphi 0, %s70
      %s87 = sphi 0, %s71
      %s93 = sphi 0, %s95
      %s96 = sphi 0, %s93
      %s97 = sphi 0, %s96
      %s113 = sphi 0, %s97
    $region4: #{tpu_custom_call.1} parent=1 // loop_header_branch
      %18 = sbr.rel (%p16) target = $region8
    $region5: #{tpu_custom_call.1} parent=1 // loop_body
      %s20 = ssub.s32 %s15, 1
      %s21 = ssub.s32 %s15, 2
      %s28 = sadd.s32 1, %s23
      %p29 = scmp.ge.s32.totalorder %s28, 3
      %s30 = scalar_select %p29, 0, %s28
      %s31 = sadd.s32 1, %s22
      %s32 = scalar_select %p29, %s31, %s22
      %p33 = scmp.ge.s32.totalorder %s32, 1
      %s34 = scalar_select %p33, 0, %s32
      %s35 = ssub.s32 %s22, %s34
      %s36 = ssub.s32 %s23, %s30
      %s37 = sor.u32 %s35, %s36
      %p38 = scmp.eq.s32.totalorder %s37, 0
      %s40 = sadd.s32 %s39, 1
      %s41 = scalar_select %p38, %s39, %s40
      %p44 = pneg %p38
      %p45 = scmp.eq.s32.totalorder %s15, 2
      %p46 = por %p44, %p45
      %p47 = scmp.ne.s32.totalorder %s39, %s42
      %p48 = scmp.eq.s32.totalorder %s15, 0
      %p49 = por %p47, %p48
      %p50 = scmp.ne.s32.totalorder %s39, %s42
      %p51 = scmp.eq.s32.totalorder %s20, 2
      %p52 = por %p50, %p51
      %p53 = scmp.ne.s32.totalorder %s42, %s43
      %p54 = scmp.eq.s32.totalorder %s20, 0
      %p55 = por %p53, %p54
      %p56 = scmp.ne.s32.totalorder %s42, %s43
      %p57 = scmp.eq.s32.totalorder %s21, 2
      %p58 = por %p56, %p57
      %p60 = scmp.ne.s32.totalorder %s43, %s59
      %p61 = scmp.eq.s32.totalorder %s21, 0
      %p62 = por %p60, %p61
      %s63 = ssub.s32 %s22, %s34
      %s64 = ssub.s32 %s23, %s30
      %s65 = sor.u32 %s63, %s64
      %p66 = scmp.eq.s32.totalorder %s65, 0
      %s68 = sadd.s32 %s67, 1
      %s69 = scalar_select %p66, %s67, %s68
      %p72 = pneg %p66
      %p73 = scmp.eq.s32.totalorder %s15, 2
      %p74 = por %p72, %p73
      %p75 = scmp.ne.s32.totalorder %s67, %s70
      %p76 = scmp.eq.s32.totalorder %s15, 0
      %p77 = por %p75, %p76
      %p78 = scmp.ne.s32.totalorder %s67, %s70
      %p79 = scmp.eq.s32.totalorder %s20, 2
      %p80 = por %p78, %p79
      %p81 = scmp.ne.s32.totalorder %s70, %s71
      %p82 = scmp.eq.s32.totalorder %s20, 0
      %p83 = por %p81, %p82
      %p84 = scmp.ne.s32.totalorder %s70, %s71
      %p85 = scmp.eq.s32.totalorder %s21, 2
      %p86 = por %p84, %p85
      %p88 = scmp.ne.s32.totalorder %s71, %s87
      %p89 = scmp.eq.s32.totalorder %s21, 0
      %p90 = por %p88, %p89
      %s91 = ssub.s32 %s22, %s34
      %p92 = scmp.eq.s32.totalorder %s91, 0
      %s94 = sadd.s32 %s93, 1
      %s95 = scalar_select %p92, %s93, %s94
      %p98 = pneg %p92
      %p99 = scmp.eq.s32.totalorder %s15, 2
      %p100 = por %p98, %p99
      %p101 = scmp.ne.s32.totalorder %s93, %s96
      %p102 = scmp.eq.s32.totalorder %s15, 0
      %p103 = por %p101, %p102
      %p104 = scmp.ne.s32.totalorder %s93, %s96
      %p105 = scmp.eq.s32.totalorder %s20, 2
      %p106 = por %p104, %p105
      %p107 = scmp.ne.s32.totalorder %s96, %s97
      %p108 = scmp.eq.s32.totalorder %s20, 0
      %p109 = por %p107, %p108
      %p110 = scmp.ne.s32.totalorder %s96, %s97
      %p111 = scmp.eq.s32.totalorder %s21, 2
      %p112 = por %p110, %p111
      %p114 = scmp.ne.s32.totalorder %s97, %s113
      %p115 = scmp.eq.s32.totalorder %s21, 0
      %p116 = por %p114, %p115
      %p117 = scmp.le.s32.totalorder 1, %s15
      %p118 = scmp.lt.s32.totalorder %s15, 4
      %p119 = pnand %p117, %p118
      %p120 = pneg %p119
      // Predicated region
      $region9: #{tpu_custom_call.1} parent=5 // pred_check
        _
      $region10: #{tpu_custom_call.1} parent=5 // pred_check_branch
        %122 = sbr.rel (%p119) target = $region12
      $region11: #{tpu_custom_call.1} parent=5 // pred_region
        %s123 = ssub.s32 %s15, 1
      $region12: #{tpu_custom_call.1} parent=5 // pred_fallthru
        _
      %p124 = scmp.lt.s32.totalorder %s15, 3
      // Predicated region
      $region13: #{tpu_custom_call.1} parent=5 // pred_check
        %p125 = pneg %p124
      $region14: #{tpu_custom_call.1} parent=5 // pred_check_branch
        %127 = sbr.rel (%p125) target = $region16
      $region15: #{tpu_custom_call.1} parent=5 // pred_region
        // Predicated region
        $region17: #{tpu_custom_call.1} parent=15 // pred_check
          %p128 = pneg %p49
        $region18: #{tpu_custom_call.1} parent=15 // pred_check_branch
          %130 = sbr.rel (%p128) target = $region20
        $region19: #{tpu_custom_call.1} parent=15 // pred_region
          %s131 = sand.u32 %s39, 1
          %s132 = scalar_lea.sflag [#allocation4], %s131
          %s133 = sand.u32 %s39, 1
          %s134 = smul.addr %s133, 16
          %s135 = scalar_lea.vmem [#allocation3], %s134
          %s136 = smul.u32 2, %s22
          %s138 = ssub.s32 256, 256
          %139 = vsyncadd %s132, %s138
          %s140 = smul.addr %s136, 3
          %s141 = sadd.s32 %s23, %s140
          %s142 = smul.addr %s141, 128
          %s143 = scalar_lea.hbm %s0, %s142
          %s144 = sshll.u32 %s135, 4
          %s145 = int_to_ptr.vmem [resolvable:$true] %s144
          %150 = dma.hbm_to_vmem [thread:$0]  %s143, 256, %s145, %s132, 384, 128, 8
        $region20: #{tpu_custom_call.1} parent=15 // pred_fallthru
          _
        // Predicated region
        $region21: #{tpu_custom_call.1} parent=15 // pred_check
          %p151 = pneg %p77
        $region22: #{tpu_custom_call.1} parent=15 // pred_check_branch
          %153 = sbr.rel (%p151) target = $region24
        $region23: #{tpu_custom_call.1} parent=15 // pred_region
          %s154 = sand.u32 %s67, 1
          %s155 = scalar_lea.sflag [#allocation7], %s154
          %s156 = sand.u32 %s67, 1
          %s157 = smul.addr %s156, 16
          %s158 = scalar_lea.vmem [#allocation6], %s157
          %s159 = smul.u32 2, %s22
          %s161 = ssub.s32 256, 256
          %162 = vsyncadd %s155, %s161
          %s163 = smul.addr %s159, 3
          %s164 = sadd.s32 %s23, %s163
          %s165 = smul.addr %s164, 128
          %s166 = scalar_lea.hbm %s1, %s165
          %s167 = sshll.u32 %s158, 4
          %s168 = int_to_ptr.vmem [resolvable:$true] %s167
          %173 = dma.hbm_to_vmem [thread:$0]  %s166, 256, %s168, %s155, 384, 128, 8
        $region24: #{tpu_custom_call.1} parent=15 // pred_fallthru
          _
      $region16: #{tpu_custom_call.1} parent=5 // pred_fallthru
        _
      %p174 = scmp.le.s32.totalorder 1, %s15
      %p175 = scmp.lt.s32.totalorder %s15, 4
      %p176 = pnand %p174, %p175
      %p177 = pneg %p176
      // Predicated region
      $region25: #{tpu_custom_call.1} parent=5 // pred_check
        _
      $region26: #{tpu_custom_call.1} parent=5 // pred_check_branch
        %179 = sbr.rel (%p176) target = $region28
      $region27: #{tpu_custom_call.1} parent=5 // pred_region
        %s180 = ssub.s32 %s15, 1
        %s181 = sand.u32 %s42, 1
        %s182 = scalar_lea.sflag [#allocation4], %s181
        %s183 = sand.u32 %s42, 1
        %s184 = smul.addr %s183, 16
        %s185 = scalar_lea.vmem [#allocation3], %s184
        // Predicated region
        $region29: #{tpu_custom_call.1} parent=27 // pred_check
          %p186 = pneg %p55
        $region30: #{tpu_custom_call.1} parent=27 // pred_check_branch
          %188 = sbr.rel (%p186) target = $region32
        $region31: #{tpu_custom_call.1} parent=27 // pred_region
          %189 = dma.done %s182, 256
        $region32: #{tpu_custom_call.1} parent=27 // pred_fallthru
          _
        %s190 = sand.u32 %s70, 1
        %s191 = scalar_lea.sflag [#allocation7], %s190
        %s192 = sand.u32 %s70, 1
        %s193 = smul.addr %s192, 16
        %s194 = scalar_lea.vmem [#allocation6], %s193
        // Predicated region
        $region33: #{tpu_custom_call.1} parent=27 // pred_check
          %p195 = pneg %p83
        $region34: #{tpu_custom_call.1} parent=27 // pred_check_branch
          %197 = sbr.rel (%p195) target = $region36
        $region35: #{tpu_custom_call.1} parent=27 // pred_region
          %198 = dma.done %s191, 256
        $region36: #{tpu_custom_call.1} parent=27 // pred_fallthru
          _
        %s199 = sand.u32 %s42, 1
        %s200 = scalar_lea.sflag [#allocation4], %s199
        %s201 = sand.u32 %s42, 1
        %s202 = smul.addr %s201, 16
        %s203 = scalar_lea.vmem [#allocation3], %s202
        %p204 = pneg %p55
        %p205 = pneg %p52
        %s206 = sand.u32 %s70, 1
        %s207 = scalar_lea.sflag [#allocation7], %s206
        %s208 = sand.u32 %s70, 1
        %s209 = smul.addr %s208, 16
        %s210 = scalar_lea.vmem [#allocation6], %s209
        %p211 = pneg %p83
        %p212 = pneg %p80
        %p213 = pneg %p109
        %p214 = pneg %p106
        %s215 = smul.u32 2, %s24
        %s216 = smul.u32 2, %s24
        %p217 = scmp.eq.s32.totalorder %s25, 0
        // Predicated region
        $region37: #{tpu_custom_call.1} parent=27 // pred_check
          %p218 = pneg %p217
        $region38: #{tpu_custom_call.1} parent=27 // pred_check_branch
          %220 = sbr.rel (%p218) target = $region40
        $region39: #{tpu_custom_call.1} parent=27 // pred_region
          %221 = vst [vmem:[#allocation2] sm:$0xff] 0.0
          %222 = vst [vmem:[#allocation2 + $0x8] sm:$0xff] 0.0
        $region40: #{tpu_custom_call.1} parent=27 // pred_fallthru
          _
        %v223 = vld [vmem:[%s185] sm:$0xff]
        %v224 = vld [vmem:[%s185 + $0x8] sm:$0xff]
        %v225 = vld [vmem:[%s194] sm:$0xff]
        %v226 = vld [vmem:[%s194 + $0x8] sm:$0xff]
        %v227 = vsub.f32 %v223, %v225
        %v228 = vsub.f32 %v224, %v226
        %v229 = vadd.f32 %v227, 1e-06
        %v230 = vadd.f32 %v228, 1e-06
        %v231 = vmul.f32 %v229, %v229
        %v232 = vmul.f32 %v230, %v230
        %v233 = vld [vmem:[#allocation2] sm:$0xff]
        %v234 = vld [vmem:[#allocation2 + $0x8] sm:$0xff]
        %v235 = vadd.f32 %v233, %v231
        %v236 = vadd.f32 %v234, %v232
        %237 = vst [vmem:[#allocation2] sm:$0xff] %v235
        %238 = vst [vmem:[#allocation2 + $0x8] sm:$0xff] %v236
        %p239 = scmp.eq.s32.totalorder %s25, 2
        // Predicated region
        $region41: #{tpu_custom_call.1} parent=27 // pred_check
          %p240 = pneg %p239
        $region42: #{tpu_custom_call.1} parent=27 // pred_check_branch
          %242 = sbr.rel (%p240) target = $region44
        $region43: #{tpu_custom_call.1} parent=27 // pred_region
          %v243 = vld [vmem:[#allocation2] sm:$0xff]
          %v244 = vld [vmem:[#allocation2 + $0x8] sm:$0xff]
          %245 = vmatprep.subr.mxu0 0.0
          %v246 = vand.u32 %v243, 4294901760
          %247 = vmatpush1.xpose.msra.mxu0 %v246
          %248 = vmatprep.subr.mxu0 0.0
          %v249 = vand.u32 %v244, 4294901760
          %250 = vmatpush1.xpose.msra.mxu0 %v249
          %251 = vmatprep.subr.mxu0 0.0
          %252 = vmatpush1.xpose.msra.mxu0 0.0
          %253 = vmatprep.subr.mxu0 0.0
          %254 = vmatpush1.xpose.msra.mxu0 0.0
          %255 = vmatprep.subr.mxu0 0.0
          %256 = vmatpush1.xpose.msra.mxu0 0.0
          %257 = vmatprep.subr.mxu0 0.0
          %258 = vmatpush1.xpose.msra.mxu0 0.0
          %259 = vmatprep.subr.mxu0 0.0
          %260 = vmatpush1.xpose.msra.mxu0 0.0
          %261 = vmatprep.subr.mxu0 0.0
          %262 = vmatpush1.xpose.msra.mxu0 0.0
          %263 = vmatprep.subr.mxu0 0.0
          %264 = vmatpush1.xpose.msra.mxu0 0.0
          %265 = vmatprep.subr.mxu0 0.0
          %266 = vmatpush1.xpose.msra.mxu0 0.0
          %267 = vmatprep.subr.mxu0 0.0
          %268 = vmatpush1.xpose.msra.mxu0 0.0
          %269 = vmatprep.subr.mxu0 0.0
          %270 = vmatpush1.xpose.msra.mxu0 0.0
          %271 = vmatprep.subr.mxu0 0.0
          %272 = vmatpush1.xpose.msra.mxu0 0.0
          %273 = vmatprep.subr.mxu0 0.0
          %274 = vmatpush1.xpose.msra.mxu0 0.0
          %275 = vmatprep.subr.mxu0 0.0
          %276 = vmatpush1.xpose.msra.mxu0 0.0
          %277 = vmatprep.subr.mxu0 0.0
          %278 = vmatpush1.xpose.msra.mxu0 0.0
          %279 = vmatprep.subr.mxu0 0.0
          %280 = vmatpush1.xpose.msra.mxu0 0.0
          %281 = vmatprep.subr.mxu0 0.0
          %282 = vmatpush1.xpose.msra.mxu0 0.0
          %283 = vmatprep.subr.mxu0 0.0
          %284 = vmatpush1.xpose.msra.mxu0 0.0
          %285 = vmatprep.subr.mxu0 0.0
          %286 = vmatpush1.xpose.msra.mxu0 0.0
          %287 = vmatprep.subr.mxu0 0.0
          %288 = vmatpush1.xpose.msra.mxu0 0.0
          %289 = vmatprep.subr.mxu0 0.0
          %290 = vmatpush1.xpose.msra.mxu0 0.0
          %291 = vmatprep.subr.mxu0 0.0
          %292 = vmatpush1.xpose.msra.mxu0 0.0
          %293 = vmatprep.subr.mxu0 0.0
          %294 = vmatpush1.xpose.msra.mxu0 0.0
          %295 = vmatprep.subr.mxu0 0.0
          %296 = vmatpush1.xpose.msra.mxu0 0.0
          %297 = vmatprep.subr.mxu0 0.0
          %298 = vmatpush1.xpose.msra.mxu0 0.0
          %299 = vmatprep.subr.mxu0 0.0
          %300 = vmatpush1.xpose.msra.mxu0 0.0
          %301 = vmatprep.subr.mxu0 0.0
          %302 = vmatpush1.xpose.msra.mxu0 0.0
          %303 = vmatprep.subr.mxu0 0.0
          %304 = vmatpush1.xpose.msra.mxu0 0.0
          %305 = vmatprep.subr.mxu0 0.0
          %306 = vmatpush1.xpose.msra.mxu0 0.0
          %307 = vmatprep.subr.mxu0 0.0
          %308 = vmatpush1.xpose.msra.mxu0 0.0
          %309 = vmatprep.subr.mxu0 0.0
          %310 = vmatpush1.xpose.msra.mxu0 0.0
          %311 = vmatprep.mubr.f32.mxu0 0.0
          %312 = vmatmul.mubr.f32.gmra.mrb[0].mxu0 0.0
          %v313 = vpop.f32.mrb[0].mxu0
          %v314 = vadd.f32 0.0, %v313
          %v315 = vpop.f32.mrb[0].mxu0
          %316 = vdwg.mxu0
          %317 = vmatprep.subr.mxu0 0.0
          %v318 = vand.u32 %v243, 4294901760
          %v319 = vsub.f32 %v243, %v318
          %v320 = vand.u32 %v319, 4294901760
          %v321 = vsub.f32 %v319, %v320
          %v322 = vand.u32 %v321, 4294901760
          %323 = vmatpush1.xpose.msra.mxu0 %v322
          %324 = vmatprep.subr.mxu0 0.0
          %v325 = vand.u32 %v244, 4294901760
          %v326 = vsub.f32 %v244, %v325
          %v327 = vand.u32 %v326, 4294901760
          %v328 = vsub.f32 %v326, %v327
          %v329 = vand.u32 %v328, 4294901760
          %330 = vmatpush1.xpose.msra.mxu0 %v329
          %331 = vmatprep.subr.mxu0 0.0
          %332 = vmatpush1.xpose.msra.mxu0 0.0
          %333 = vmatprep.subr.mxu0 0.0
          %334 = vmatpush1.xpose.msra.mxu0 0.0
          %335 = vmatprep.subr.mxu0 0.0
          %336 = vmatpush1.xpose.msra.mxu0 0.0
          %337 = vmatprep.subr.mxu0 0.0
          %338 = vmatpush1.xpose.msra.mxu0 0.0
          %339 = vmatprep.subr.mxu0 0.0
          %340 = vmatpush1.xpose.msra.mxu0 0.0
          %341 = vmatprep.subr.mxu0 0.0
          %342 = vmatpush1.xpose.msra.mxu0 0.0
          %343 = vmatprep.subr.mxu0 0.0
          %344 = vmatpush1.xpose.msra.mxu0 0.0
          %345 = vmatprep.subr.mxu0 0.0
          %346 = vmatpush1.xpose.msra.mxu0 0.0
          %347 = vmatprep.subr.mxu0 0.0
          %348 = vmatpush1.xpose.msra.mxu0 0.0
          %349 = vmatprep.subr.mxu0 0.0
          %350 = vmatpush1.xpose.msra.mxu0 0.0
          %351 = vmatprep.subr.mxu0 0.0
          %352 = vmatpush1.xpose.msra.mxu0 0.0
          %353 = vmatprep.subr.mxu0 0.0
          %354 = vmatpush1.xpose.msra.mxu0 0.0
          %355 = vmatprep.subr.mxu0 0.0
          %356 = vmatpush1.xpose.msra.mxu0 0.0
          %357 = vmatprep.subr.mxu0 0.0
          %358 = vmatpush1.xpose.msra.mxu0 0.0
          %359 = vmatprep.subr.mxu0 0.0
          %360 = vmatpush1.xpose.msra.mxu0 0.0
          %361 = vmatprep.subr.mxu0 0.0
          %362 = vmatpush1.xpose.msra.mxu0 0.0
          %363 = vmatprep.subr.mxu0 0.0
          %364 = vmatpush1.xpose.msra.mxu0 0.0
          %365 = vmatprep.subr.mxu0 0.0
          %366 = vmatpush1.xpose.msra.mxu0 0.0
          %367 = vmatprep.subr.mxu0 0.0
          %368 = vmatpush1.xpose.msra.mxu0 0.0
          %369 = vmatprep.subr.mxu0 0.0
          %370 = vmatpush1.xpose.msra.mxu0 0.0
          %371 = vmatprep.subr.mxu0 0.0
          %372 = vmatpush1.xpose.msra.mxu0 0.0
          %373 = vmatprep.subr.mxu0 0.0
          %374 = vmatpush1.xpose.msra.mxu0 0.0
          %375 = vmatprep.subr.mxu0 0.0
          %376 = vmatpush1.xpose.msra.mxu0 0.0
          %377 = vmatprep.subr.mxu0 0.0
          %378 = vmatpush1.xpose.msra.mxu0 0.0
          %379 = vmatprep.subr.mxu0 0.0
          %380 = vmatpush1.xpose.msra.mxu0 0.0
          %381 = vmatprep.subr.mxu0 0.0
          %382 = vmatpush1.xpose.msra.mxu0 0.0
          %383 = vmatprep.subr.mxu0 0.0
          %384 = vmatpush1.xpose.msra.mxu0 0.0
          %385 = vmatprep.subr.mxu0 0.0
          %386 = vmatpush1.xpose.msra.mxu0 0.0
          %387 = vmatprep.subr.mxu0 0.0
          %388 = vmatpush1.xpose.msra.mxu0 0.0
          %389 = vmatprep.subr.mxu0 0.0
          %390 = vmatpush1.xpose.msra.mxu0 0.0
          %391 = vmatprep.mubr.f32.mxu0 0.0
          %392 = vmatmul.mubr.f32.gmra.mrb[0].mxu0 1.0
          %v393 = vpop.f32.mrb[0].mxu0
          %v394 = vadd.f32 %v314, %v393
          %v395 = vpop.f32.mrb[0].mxu0
          %396 = vdwg.mxu0
          %397 = vmatprep.subr.mxu0 0.0
          %v398 = vand.u32 %v243, 4294901760
          %v399 = vsub.f32 %v243, %v398
          %400 = vmatpush1.xpose.msra.mxu0 %v399
          %401 = vmatprep.subr.mxu0 0.0
          %v402 = vand.u32 %v244, 4294901760
          %v403 = vsub.f32 %v244, %v402
          %404 = vmatpush1.xpose.msra.mxu0 %v403
          %405 = vmatprep.subr.mxu0 0.0
          %406 = vmatpush1.xpose.msra.mxu0 0.0
          %407 = vmatprep.subr.mxu0 0.0
          %408 = vmatpush1.xpose.msra.mxu0 0.0
          %409 = vmatprep.subr.mxu0 0.0
          %410 = vmatpush1.xpose.msra.mxu0 0.0
          %411 = vmatprep.subr.mxu0 0.0
          %412 = vmatpush1.xpose.msra.mxu0 0.0
          %413 = vmatprep.subr.mxu0 0.0
          %414 = vmatpush1.xpose.msra.mxu0 0.0
          %415 = vmatprep.subr.mxu0 0.0
          %416 = vmatpush1.xpose.msra.mxu0 0.0
          %417 = vmatprep.subr.mxu0 0.0
          %418 = vmatpush1.xpose.msra.mxu0 0.0
          %419 = vmatprep.subr.mxu0 0.0
          %420 = vmatpush1.xpose.msra.mxu0 0.0
          %421 = vmatprep.subr.mxu0 0.0
          %422 = vmatpush1.xpose.msra.mxu0 0.0
          %423 = vmatprep.subr.mxu0 0.0
          %424 = vmatpush1.xpose.msra.mxu0 0.0
          %425 = vmatprep.subr.mxu0 0.0
          %426 = vmatpush1.xpose.msra.mxu0 0.0
          %427 = vmatprep.subr.mxu0 0.0
          %428 = vmatpush1.xpose.msra.mxu0 0.0
          %429 = vmatprep.subr.mxu0 0.0
          %430 = vmatpush1.xpose.msra.mxu0 0.0
          %431 = vmatprep.subr.mxu0 0.0
          %432 = vmatpush1.xpose.msra.mxu0 0.0
          %433 = vmatprep.subr.mxu0 0.0
          %434 = vmatpush1.xpose.msra.mxu0 0.0
          %435 = vmatprep.subr.mxu0 0.0
          %436 = vmatpush1.xpose.msra.mxu0 0.0
          %437 = vmatprep.subr.mxu0 0.0
          %438 = vmatpush1.xpose.msra.mxu0 0.0
          %439 = vmatprep.subr.mxu0 0.0
          %440 = vmatpush1.xpose.msra.mxu0 0.0
          %441 = vmatprep.subr.mxu0 0.0
          %442 = vmatpush1.xpose.msra.mxu0 0.0
          %443 = vmatprep.subr.mxu0 0.0
          %444 = vmatpush1.xpose.msra.mxu0 0.0
          %445 = vmatprep.subr.mxu0 0.0
          %446 = vmatpush1.xpose.msra.mxu0 0.0
          %447 = vmatprep.subr.mxu0 0.0
          %448 = vmatpush1.xpose.msra.mxu0 0.0
          %449 = vmatprep.subr.mxu0 0.0
          %450 = vmatpush1.xpose.msra.mxu0 0.0
          %451 = vmatprep.subr.mxu0 0.0
          %452 = vmatpush1.xpose.msra.mxu0 0.0
          %453 = vmatprep.subr.mxu0 0.0
          %454 = vmatpush1.xpose.msra.mxu0 0.0
          %455 = vmatprep.subr.mxu0 0.0
          %456 = vmatpush1.xpose.msra.mxu0 0.0
          %457 = vmatprep.subr.mxu0 0.0
          %458 = vmatpush1.xpose.msra.mxu0 0.0
          %459 = vmatprep.subr.mxu0 0.0
          %460 = vmatpush1.xpose.msra.mxu0 0.0
          %461 = vmatprep.subr.mxu0 0.0
          %462 = vmatpush1.xpose.msra.mxu0 0.0
          %463 = vmatprep.subr.mxu0 0.0
          %464 = vmatpush1.xpose.msra.mxu0 0.0
          %465 = vmatprep.mubr.f32.mxu0 0.0
          %466 = vmatmul.mubr.f32.gmra.mrb[0].mxu0 0.0
          %v467 = vpop.f32.mrb[0].mxu0
          %v468 = vadd.f32 %v394, %v467
          %v469 = vpop.f32.mrb[0].mxu0
          %470 = vdwg.mxu0
          %471 = vmatprep.subr.mxu0 0.0
          %v472 = vand.u32 %v243, 4294901760
          %473 = vmatpush1.xpose.msra.mxu0 %v472
          %474 = vmatprep.subr.mxu0 0.0
          %v475 = vand.u32 %v244, 4294901760
          %476 = vmatpush1.xpose.msra.mxu0 %v475
          %477 = vmatprep.subr.mxu0 0.0
          %478 = vmatpush1.xpose.msra.mxu0 0.0
          %479 = vmatprep.subr.mxu0 0.0
          %480 = vmatpush1.xpose.msra.mxu0 0.0
          %481 = vmatprep.subr.mxu0 0.0
          %482 = vmatpush1.xpose.msra.mxu0 0.0
          %483 = vmatprep.subr.mxu0 0.0
          %484 = vmatpush1.xpose.msra.mxu0 0.0
          %485 = vmatprep.subr.mxu0 0.0
          %486 = vmatpush1.xpose.msra.mxu0 0.0
          %487 = vmatprep.subr.mxu0 0.0
          %488 = vmatpush1.xpose.msra.mxu0 0.0
          %489 = vmatprep.subr.mxu0 0.0
          %490 = vmatpush1.xpose.msra.mxu0 0.0
          %491 = vmatprep.subr.mxu0 0.0
          %492 = vmatpush1.xpose.msra.mxu0 0.0
          %493 = vmatprep.subr.mxu0 0.0
          %494 = vmatpush1.xpose.msra.mxu0 0.0
          %495 = vmatprep.subr.mxu0 0.0
          %496 = vmatpush1.xpose.msra.mxu0 0.0
          %497 = vmatprep.subr.mxu0 0.0
          %498 = vmatpush1.xpose.msra.mxu0 0.0
          %499 = vmatprep.subr.mxu0 0.0
          %500 = vmatpush1.xpose.msra.mxu0 0.0
          %501 = vmatprep.subr.mxu0 0.0
          %502 = vmatpush1.xpose.msra.mxu0 0.0
          %503 = vmatprep.subr.mxu0 0.0
          %504 = vmatpush1.xpose.msra.mxu0 0.0
          %505 = vmatprep.subr.mxu0 0.0
          %506 = vmatpush1.xpose.msra.mxu0 0.0
          %507 = vmatprep.subr.mxu0 0.0
          %508 = vmatpush1.xpose.msra.mxu0 0.0
          %509 = vmatprep.subr.mxu0 0.0
          %510 = vmatpush1.xpose.msra.mxu0 0.0
          %511 = vmatprep.subr.mxu0 0.0
          %512 = vmatpush1.xpose.msra.mxu0 0.0
          %513 = vmatprep.subr.mxu0 0.0
          %514 = vmatpush1.xpose.msra.mxu0 0.0
          %515 = vmatprep.subr.mxu0 0.0
          %516 = vmatpush1.xpose.msra.mxu0 0.0
          %517 = vmatprep.subr.mxu0 0.0
          %518 = vmatpush1.xpose.msra.mxu0 0.0
          %519 = vmatprep.subr.mxu0 0.0
          %520 = vmatpush1.xpose.msra.mxu0 0.0
          %521 = vmatprep.subr.mxu0 0.0
          %522 = vmatpush1.xpose.msra.mxu0 0.0
          %523 = vmatprep.subr.mxu0 0.0
          %524 = vmatpush1.xpose.msra.mxu0 0.0
          %525 = vmatprep.subr.mxu0 0.0
          %526 = vmatpush1.xpose.msra.mxu0 0.0
          %527 = vmatprep.subr.mxu0 0.0
          %528 = vmatpush1.xpose.msra.mxu0 0.0
          %529 = vmatprep.subr.mxu0 0.0
          %530 = vmatpush1.xpose.msra.mxu0 0.0
          %531 = vmatprep.subr.mxu0 0.0
          %532 = vmatpush1.xpose.msra.mxu0 0.0
          %533 = vmatprep.subr.mxu0 0.0
          %534 = vmatpush1.xpose.msra.mxu0 0.0
          %535 = vmatprep.subr.mxu0 0.0
          %536 = vmatpush1.xpose.msra.mxu0 0.0
          %537 = vmatprep.mubr.f32.mxu0 0.0
          %538 = vmatmul.mubr.f32.gmra.mrb[0].mxu0 0.0
          %v539 = vpop.f32.mrb[0].mxu0
          %v540 = vadd.f32 %v468, %v539
          %v541 = vpop.f32.mrb[0].mxu0
          %542 = vdwg.mxu0
          %543 = vmatprep.subr.mxu0 0.0
          %v544 = vand.u32 %v243, 4294901760
          %v545 = vsub.f32 %v243, %v544
          %v546 = vand.u32 %v545, 4294901760
          %547 = vmatpush1.xpose.msra.mxu0 %v546
          %548 = vmatprep.subr.mxu0 0.0
          %v549 = vand.u32 %v244, 4294901760
          %v550 = vsub.f32 %v244, %v549
          %v551 = vand.u32 %v550, 4294901760
          %552 = vmatpush1.xpose.msra.mxu0 %v551
          %553 = vmatprep.subr.mxu0 0.0
          %554 = vmatpush1.xpose.msra.mxu0 0.0
          %555 = vmatprep.subr.mxu0 0.0
          %556 = vmatpush1.xpose.msra.mxu0 0.0
          %557 = vmatprep.subr.mxu0 0.0
          %558 = vmatpush1.xpose.msra.mxu0 0.0
          %559 = vmatprep.subr.mxu0 0.0
          %560 = vmatpush1.xpose.msra.mxu0 0.0
          %561 = vmatprep.subr.mxu0 0.0
          %562 = vmatpush1.xpose.msra.mxu0 0.0
          %563 = vmatprep.subr.mxu0 0.0
          %564 = vmatpush1.xpose.msra.mxu0 0.0
          %565 = vmatprep.subr.mxu0 0.0
          %566 = vmatpush1.xpose.msra.mxu0 0.0
          %567 = vmatprep.subr.mxu0 0.0
          %568 = vmatpush1.xpose.msra.mxu0 0.0
          %569 = vmatprep.subr.mxu0 0.0
          %570 = vmatpush1.xpose.msra.mxu0 0.0
          %571 = vmatprep.subr.mxu0 0.0
          %572 = vmatpush1.xpose.msra.mxu0 0.0
          %573 = vmatprep.subr.mxu0 0.0
          %574 = vmatpush1.xpose.msra.mxu0 0.0
          %575 = vmatprep.subr.mxu0 0.0
          %576 = vmatpush1.xpose.msra.mxu0 0.0
          %577 = vmatprep.subr.mxu0 0.0
          %578 = vmatpush1.xpose.msra.mxu0 0.0
          %579 = vmatprep.subr.mxu0 0.0
          %580 = vmatpush1.xpose.msra.mxu0 0.0
          %581 = vmatprep.subr.mxu0 0.0
          %582 = vmatpush1.xpose.msra.mxu0 0.0
          %583 = vmatprep.subr.mxu0 0.0
          %584 = vmatpush1.xpose.msra.mxu0 0.0
          %585 = vmatprep.subr.mxu0 0.0
          %586 = vmatpush1.xpose.msra.mxu0 0.0
          %587 = vmatprep.subr.mxu0 0.0
          %588 = vmatpush1.xpose.msra.mxu0 0.0
          %589 = vmatprep.subr.mxu0 0.0
          %590 = vmatpush1.xpose.msra.mxu0 0.0
          %591 = vmatprep.subr.mxu0 0.0
          %592 = vmatpush1.xpose.msra.mxu0 0.0
          %593 = vmatprep.subr.mxu0 0.0
          %594 = vmatpush1.xpose.msra.mxu0 0.0
          %595 = vmatprep.subr.mxu0 0.0
          %596 = vmatpush1.xpose.msra.mxu0 0.0
          %597 = vmatprep.subr.mxu0 0.0
          %598 = vmatpush1.xpose.msra.mxu0 0.0
          %599 = vmatprep.subr.mxu0 0.0
          %600 = vmatpush1.xpose.msra.mxu0 0.0
          %601 = vmatprep.subr.mxu0 0.0
          %602 = vmatpush1.xpose.msra.mxu0 0.0
          %603 = vmatprep.subr.mxu0 0.0
          %604 = vmatpush1.xpose.msra.mxu0 0.0
          %605 = vmatprep.subr.mxu0 0.0
          %606 = vmatpush1.xpose.msra.mxu0 0.0
          %607 = vmatprep.subr.mxu0 0.0
          %608 = vmatpush1.xpose.msra.mxu0 0.0
          %609 = vmatprep.subr.mxu0 0.0
          %610 = vmatpush1.xpose.msra.mxu0 0.0
          %611 = vmatprep.subr.mxu0 0.0
          %612 = vmatpush1.xpose.msra.mxu0 0.0
          %613 = vmatprep.mubr.f32.mxu0 0.0
          %614 = vmatmul.mubr.f32.gmra.mrb[0].mxu0 1.0
          %v615 = vpop.f32.mrb[0].mxu0
          %v616 = vadd.f32 %v540, %v615
          %v617 = vpop.f32.mrb[0].mxu0
          %618 = vdwg.mxu0
          %619 = vmatprep.subr.mxu0 0.0
          %v620 = vand.u32 %v243, 4294901760
          %621 = vmatpush1.xpose.msra.mxu0 %v620
          %622 = vmatprep.subr.mxu0 0.0
          %v623 = vand.u32 %v244, 4294901760
          %624 = vmatpush1.xpose.msra.mxu0 %v623
          %625 = vmatprep.subr.mxu0 0.0
          %626 = vmatpush1.xpose.msra.mxu0 0.0
          %627 = vmatprep.subr.mxu0 0.0
          %628 = vmatpush1.xpose.msra.mxu0 0.0
          %629 = vmatprep.subr.mxu0 0.0
          %630 = vmatpush1.xpose.msra.mxu0 0.0
          %631 = vmatprep.subr.mxu0 0.0
          %632 = vmatpush1.xpose.msra.mxu0 0.0
          %633 = vmatprep.subr.mxu0 0.0
          %634 = vmatpush1.xpose.msra.mxu0 0.0
          %635 = vmatprep.subr.mxu0 0.0
          %636 = vmatpush1.xpose.msra.mxu0 0.0
          %637 = vmatprep.subr.mxu0 0.0
          %638 = vmatpush1.xpose.msra.mxu0 0.0
          %639 = vmatprep.subr.mxu0 0.0
          %640 = vmatpush1.xpose.msra.mxu0 0.0
          %641 = vmatprep.subr.mxu0 0.0
          %642 = vmatpush1.xpose.msra.mxu0 0.0
          %643 = vmatprep.subr.mxu0 0.0
          %644 = vmatpush1.xpose.msra.mxu0 0.0
          %645 = vmatprep.subr.mxu0 0.0
          %646 = vmatpush1.xpose.msra.mxu0 0.0
          %647 = vmatprep.subr.mxu0 0.0
          %648 = vmatpush1.xpose.msra.mxu0 0.0
          %649 = vmatprep.subr.mxu0 0.0
          %650 = vmatpush1.xpose.msra.mxu0 0.0
          %651 = vmatprep.subr.mxu0 0.0
          %652 = vmatpush1.xpose.msra.mxu0 0.0
          %653 = vmatprep.subr.mxu0 0.0
          %654 = vmatpush1.xpose.msra.mxu0 0.0
          %655 = vmatprep.subr.mxu0 0.0
          %656 = vmatpush1.xpose.msra.mxu0 0.0
          %657 = vmatprep.subr.mxu0 0.0
          %658 = vmatpush1.xpose.msra.mxu0 0.0
          %659 = vmatprep.subr.mxu0 0.0
          %660 = vmatpush1.xpose.msra.mxu0 0.0
          %661 = vmatprep.subr.mxu0 0.0
          %662 = vmatpush1.xpose.msra.mxu0 0.0
          %663 = vmatprep.subr.mxu0 0.0
          %664 = vmatpush1.xpose.msra.mxu0 0.0
          %665 = vmatprep.subr.mxu0 0.0
          %666 = vmatpush1.xpose.msra.mxu0 0.0
          %667 = vmatprep.subr.mxu0 0.0
          %668 = vmatpush1.xpose.msra.mxu0 0.0
          %669 = vmatprep.subr.mxu0 0.0
          %670 = vmatpush1.xpose.msra.mxu0 0.0
          %671 = vmatprep.subr.mxu0 0.0
          %672 = vmatpush1.xpose.msra.mxu0 0.0
          %673 = vmatprep.subr.mxu0 0.0
          %674 = vmatpush1.xpose.msra.mxu0 0.0
          %675 = vmatprep.subr.mxu0 0.0
          %676 = vmatpush1.xpose.msra.mxu0 0.0
          %677 = vmatprep.subr.mxu0 0.0
          %678 = vmatpush1.xpose.msra.mxu0 0.0
          %679 = vmatprep.subr.mxu0 0.0
          %680 = vmatpush1.xpose.msra.mxu0 0.0
          %681 = vmatprep.subr.mxu0 0.0
          %682 = vmatpush1.xpose.msra.mxu0 0.0
          %683 = vmatprep.subr.mxu0 0.0
          %684 = vmatpush1.xpose.msra.mxu0 0.0
          %685 = vmatprep.mubr.f32.mxu0 0.0
          %686 = vmatmul.mubr.f32.gmra.mrb[0].mxu0 1.0
          %v687 = vpop.f32.mrb[0].mxu0
          %v688 = vadd.f32 %v616, %v687
          %v689 = vpop.f32.mrb[0].mxu0
          %690 = vdwg.mxu0
          %v691 = vrsqrt.pop %v688
          %v692 = vmul.f32 %v688, %v691
          %vm693 = vcmp.eq.f32.partialorder %v688, inf
          %v694 = vsel %vm693, %v688, %v692
          %vm695 = vcmp.eq.f32.partialorder %v688, 0.0
          %v696 = vand.u32 %v688, 2147483648
          %v697 = vsel %vm695, %v696, %v694
          %vm698 = vcmask 122880
          %699 = vst.msk [vmem:[#allocation8] sm:$0x1] %vm698, %v697
        $region44: #{tpu_custom_call.1} parent=27 // pred_fallthru
          _
        // Predicated region
        $region45: #{tpu_custom_call.1} parent=27 // pred_check
          %p700 = pneg %p106
        $region46: #{tpu_custom_call.1} parent=27 // pred_check_branch
          %702 = sbr.rel (%p700) target = $region48
        $region47: #{tpu_custom_call.1} parent=27 // pred_region
          %s704 = ssub.s32 16, 16
          %705 = vsyncadd [#allocation5], %s704
          %s706 = smul.addr %s24, 16
          %s707 = scalar_lea.hbm %s2, %s706
          %s709 = sshll.u32 [#allocation8], 4
          %s710 = int_to_ptr.vmem [resolvable:$true] %s709
          %712 = dma.vmem_to_hbm [thread:$0]  %s710, 16, %s707, [#allocation5]
        $region48: #{tpu_custom_call.1} parent=27 // pred_fallthru
          _
        // Predicated region
        $region49: #{tpu_custom_call.1} parent=27 // pred_check
          %p713 = pneg %p106
        $region50: #{tpu_custom_call.1} parent=27 // pred_check_branch
          %715 = sbr.rel (%p713) target = $region52
        $region51: #{tpu_custom_call.1} parent=27 // pred_region
          %716 = dma.done [#allocation5], 16
        $region52: #{tpu_custom_call.1} parent=27 // pred_fallthru
          _
      $region28: #{tpu_custom_call.1} parent=5 // pred_fallthru
        _
      %p717 = scmp.le.s32.totalorder 2, %s15
      // Predicated region
      $region53: #{tpu_custom_call.1} parent=5 // pred_check
        %p718 = pneg %p717
      $region54: #{tpu_custom_call.1} parent=5 // pred_check_branch
        %720 = sbr.rel (%p718) target = $region56
      $region55: #{tpu_custom_call.1} parent=5 // pred_region
        %s721 = ssub.s32 %s15, 2
      $region56: #{tpu_custom_call.1} parent=5 // pred_fallthru
        _
    $region6: #{tpu_custom_call.1} parent=1 // loop_footer
      %s19 = sadd.s32 1, %s15
    $region7: #{tpu_custom_call.1} parent=1 // loop_footer_branch
      %14 = sbr.rel target = $region3
    $region8: #{tpu_custom_call.1} parent=1 // loop_exit
      _
    %722 = vsyncpa [#allocation4], 1
    %s723 = scalar_lea.sflag [#allocation4], 1
    %724 = vsyncpa %s723, 1
    %725 = vsyncpa [#allocation7], 1
    %s726 = scalar_lea.sflag [#allocation7], 1
    %727 = vsyncpa %s726, 1
    %728 = vsyncpa [#allocation5], 1
    %s729 = scalar_lea.sflag [#allocation5], 1
    %730 = vsyncpa %s729, 1

</llo_original>
